<compile_context>
chip_gen: v7x
topology: tpu7x:2x2x1
jax: 0.10.0
libtpu: 0.0.40
codegen_flags: <defaults>
</compile_context>

<pallas_src>
import functools
import math
from typing import NamedTuple

import jax
import jax.numpy as jnp
from jax.experimental import pallas as pl
from jax.experimental.pallas import tpu as pltpu


def _round_up(x, m):
    return (x + m - 1) // m * m


def _nbytes(shape, dtype):
    return math.prod(shape) * jnp.dtype(dtype).itemsize


def _gelu_exact(z):
    # PyTorch nn.GELU default is the exact erf form (kept for parity).
    return 0.5 * z * (1.0 + jax.lax.erf(z * (2.0 ** -0.5)))


class GCNParams(NamedTuple):
    w0: jax.Array       # (fin0_pad, rep_pad) bf16
    b0: jax.Array       # (1, rep_pad)        f32
    w_rest: jax.Array   # (max(depth-1,1), rep_pad, rep_pad) bf16
    b_rest: jax.Array   # (max(depth-1,1), 1, rep_pad)       f32
    depth: int
    in_size: int
    rep_size: int
    fin0_pad: int
    rep_pad: int


def prepare_gcn_params(weights, biases):
    """One-time parameter prep: per-layer zero-pad, bf16 cast, stack."""
    depth = len(weights)
    fin0 = int(weights[0].shape[0])
    rep = int(weights[0].shape[1])
    fin0_pad = _round_up(max(fin0, 1), 128)   # lane-dense
    rep_pad = _round_up(max(rep, 1), 128)

    w0 = jnp.zeros((fin0_pad, rep_pad), jnp.bfloat16)
    w0 = w0.at[:fin0, :rep].set(weights[0].astype(jnp.bfloat16))
    b0 = jnp.zeros((1, rep_pad), jnp.float32).at[0, :rep].set(biases[0])

    n_rest = max(depth - 1, 1)
    w_rest = jnp.zeros((n_rest, rep_pad, rep_pad), jnp.bfloat16)
    b_rest = jnp.zeros((n_rest, 1, rep_pad), jnp.float32)
    for d in range(1, depth):
        w_rest = w_rest.at[d - 1, :rep, :rep].set(weights[d].astype(jnp.bfloat16))
        b_rest = b_rest.at[d - 1, 0, :rep].set(biases[d])

    return GCNParams(w0, b0, w_rest, b_rest, depth, fin0, rep, fin0_pad, rep_pad)


def gcn_fused_kernel(adj_ref, h0_ref, w0_ref, b0_ref, wr_ref, br_ref,
                     out_ref, h_scratch, *, depth, fin0_pad, rep_pad, n_valid):
    """All GraphConv layers in one kernel; H stays VMEM-resident throughout."""
    f32 = jnp.float32
    adj = adj_ref[...]   # (Npad, Npad) bf16 — loaded once, reused every layer

    def conv(h_bf16, w_bf16, b_f32, assoc_left):
        # GraphConv: GELU(A @ H @ W + b). Static association puts the N^2
        # matmul on the smaller feature width; bf16 MXU, f32 accumulation.
        if assoc_left:
            t = jnp.dot(adj, h_bf16, preferred_element_type=f32).astype(jnp.bfloat16)
            z = jnp.dot(t, w_bf16, preferred_element_type=f32)
        else:
            t = jnp.dot(h_bf16, w_bf16, preferred_element_type=f32).astype(jnp.bfloat16)
            z = jnp.dot(adj, t, preferred_element_type=f32)
        # TODO(synk): dropout(p=0.1) is identity here (eval-mode semantics).
        return _gelu_exact(z + b_f32)   # (Npad, rep_pad) f32

    npad = out_ref.shape[0]
    row_mask = jax.lax.broadcasted_iota(jnp.int32, (npad, 1), 0) < n_valid

    # Layer 0 reads straight from h0_ref (no initial scratch copy).
    h = conv(h0_ref[...], w0_ref[...], b0_ref[...], fin0_pad <= rep_pad)

    if depth == 1:
        out_ref[...] = jnp.where(row_mask, h, 0.0).astype(out_ref.dtype)
        return

    h_scratch[...] = h.astype(jnp.bfloat16)

    if depth > 2:
        # Middle layers share a uniform (rep_pad, rep_pad) shape — fori_loop
        # bounds live ranges instead of a full static unroll.
        def body(i, carry):
            hh = conv(h_scratch[...], wr_ref[i], br_ref[i], True)
            h_scratch[...] = hh.astype(jnp.bfloat16)
            return carry

        jax.lax.fori_loop(0, depth - 2, body, 0)

    # Last layer writes straight into out_ref (no final scratch copy); padded
    # rows are zeroed so the padded output block is inert.
    h_last = conv(h_scratch[...], wr_ref[depth - 2], br_ref[depth - 2], True)
    out_ref[...] = jnp.where(row_mask, h_last, 0.0).astype(out_ref.dtype)


def gcn_forward(adj_norm, features, params: GCNParams):
    """GCN.forward: depth x (GraphConv -> Identity -> GELU -> eval Dropout)."""
    n, in_size = features.shape
    assert in_size == params.in_size
    depth, fin0_pad, rep_pad = params.depth, params.fin0_pad, params.rep_pad
    npad = _round_up(n, 128)   # lane-dense adjacency columns + 128-mult M/K

    # Zero-padded bf16 inputs (padding is mathematically inert).
    adj_p = jnp.zeros((npad, npad), jnp.bfloat16)
    adj_p = adj_p.at[:n, :n].set(adj_norm.astype(jnp.bfloat16))
    h0 = jnp.zeros((npad, fin0_pad), jnp.bfloat16)
    h0 = h0.at[:n, :in_size].set(features.astype(jnp.bfloat16))

    # VMEM budget derived from actual operand bytes (no grid -> no double
    # buffering); clamp to 64 MiB so the request is valid on v7x.
    operand_bytes = (
        _nbytes((npad, npad), jnp.bfloat16)
        + _nbytes((npad, fin0_pad), jnp.bfloat16)
        + _nbytes(params.w0.shape, params.w0.dtype)
        + _nbytes(params.b0.shape, params.b0.dtype)
        + _nbytes(params.w_rest.shape, params.w_rest.dtype)
        + _nbytes(params.b_rest.shape, params.b_rest.dtype)
        + _nbytes((npad, rep_pad), jnp.float32)      # output
        + _nbytes((npad, rep_pad), jnp.bfloat16)     # resident H scratch
    )
    vmem_limit = min(max(int(1.5 * operand_bytes) + (1 << 20), 4 << 20), 64 << 20)

    kernel = functools.partial(
        gcn_fused_kernel, depth=depth, fin0_pad=fin0_pad, rep_pad=rep_pad,
        n_valid=n)

    out = pl.pallas_call(
        kernel,
        out_shape=jax.ShapeDtypeStruct((npad, rep_pad), jnp.float32),
        in_specs=[pl.BlockSpec(memory_space=pltpu.MemorySpace.VMEM)] * 6,
        out_specs=pl.BlockSpec(memory_space=pltpu.MemorySpace.VMEM),
        scratch_shapes=[pltpu.VMEM((npad, rep_pad), jnp.bfloat16)],  # resident H
        compiler_params=pltpu.CompilerParams(vmem_limit_bytes=vmem_limit),
    )(adj_p, h0, params.w0, params.b0, params.w_rest, params.b_rest)

    return out[:n, :params.rep_size]


def make_gcn_weights(key, in_size, rep_size, depth):
    """Deterministic xavier_uniform weights / small biases (GraphConv params)."""
    weights, biases = [], []
    keys = jax.random.split(key, 2 * depth)
    for d in range(depth):
        fin = in_size if d == 0 else rep_size
        limit = (6.0 / (fin + rep_size)) ** 0.5
        w = jax.random.uniform(keys[2 * d], (fin, rep_size), jnp.float32,
                               -limit, limit)
        b = 0.1 * jax.random.normal(keys[2 * d + 1], (rep_size,), jnp.float32)
        weights.append(w)
        biases.append(b)
    return weights, biases


def _reference_forward(adj_norm, features, weights, biases):
    """Pure-JAX f32 reference (HIGHEST precision) for a correctness check."""
    h = features
    hi = jax.lax.Precision.HIGHEST
    for w, b in zip(weights, biases):
        z = jnp.dot(jnp.dot(adj_norm, h, precision=hi), w, precision=hi) + b[None, :]
        h = _gelu_exact(z)
    return h


if __name__ == "__main__":
    key = jax.random.PRNGKey(0)
    k_feat, k_adj, k_param = jax.random.split(key, 3)

    N, in_size, rep_size, depth = 16, 8, 32, 3

    # Node features.
    features = jax.random.normal(k_feat, (N, in_size), jnp.float32)

    # Random symmetric graph with self-loops -> 'both'-normalized adjacency.
    p = jax.random.uniform(k_adj, (N, N))
    adj = ((p + p.T) > 1.0).astype(jnp.float32)
    adj = jnp.maximum(adj, jnp.eye(N, dtype=jnp.float32))
    deg = jnp.maximum(adj.sum(axis=1), 1.0)
    d_inv_sqrt = 1.0 / jnp.sqrt(deg)
    adj_norm = adj * d_inv_sqrt[:, None] * d_inv_sqrt[None, :]

    weights, biases = make_gcn_weights(k_param, in_size, rep_size, depth)

    # One-time parameter prep (hoisted out of the forward path), then a single
    # jitted forward closure over the prepared params.
    params = prepare_gcn_params(weights, biases)
    gcn_apply = jax.jit(lambda a, f: gcn_forward(a, f, params))

    out = gcn_apply(adj_norm, features)
    jax.block_until_ready(out)

    assert out.shape == (N, rep_size) and out.dtype == jnp.float32
    assert bool(jnp.all(jnp.isfinite(out)))

    # bf16 operands with f32 accumulation vs an f32 HIGHEST-precision
    # reference: a few-percent tolerance is expected and acceptable for GCN.
    ref = _reference_forward(adj_norm, features, weights, biases)
    assert bool(jnp.allclose(out, ref, rtol=5e-2, atol=5e-2)), "mismatch vs reference"

    print("KERNEL_OK")
</pallas_src>

<mosaic_0001>
module attributes {stable_mosaic.version = 11 : i64} {
  func.func @gcn_fused_kernel(%arg0: memref<128x128xbf16, #tpu.memory_space<vmem>>, %arg1: memref<128x128xbf16, #tpu.memory_space<vmem>>, %arg2: memref<128x128xbf16, #tpu.memory_space<vmem>>, %arg3: memref<1x128xf32, #tpu.memory_space<vmem>>, %arg4: memref<2x128x128xbf16, #tpu.memory_space<vmem>>, %arg5: memref<2x1x128xf32, #tpu.memory_space<vmem>>, %arg6: memref<128x128xf32, #tpu.memory_space<vmem>>, %arg7: memref<128x128xbf16, #tpu.memory_space<vmem>>) attributes {dimension_semantics = [], scalar_prefetch = 0 : i64, scratch_operands = 1 : i64, tpu.core_type = #tpu.core_type<tc>} {
    %c0 = arith.constant 0 : index
    %c0_0 = arith.constant 0 : index
    %0 = vector.load %arg0[%c0, %c0_0] : memref<128x128xbf16, #tpu.memory_space<vmem>>, vector<128x128xbf16>
    %1 = tpu.iota {dimensions = array<i32: 0>} : vector<128x1xi32>
    %c16_i32 = arith.constant 16 : i32
    %2 = vector.broadcast %c16_i32 : i32 to vector<128x1xi32>
    %3 = arith.cmpi slt, %1, %2 : vector<128x1xi32>
    %c0_1 = arith.constant 0 : index
    %c0_2 = arith.constant 0 : index
    %4 = vector.load %arg1[%c0_1, %c0_2] : memref<128x128xbf16, #tpu.memory_space<vmem>>, vector<128x128xbf16>
    %c0_3 = arith.constant 0 : index
    %c0_4 = arith.constant 0 : index
    %5 = vector.load %arg2[%c0_3, %c0_4] : memref<128x128xbf16, #tpu.memory_space<vmem>>, vector<128x128xbf16>
    %c0_5 = arith.constant 0 : index
    %c0_6 = arith.constant 0 : index
    %6 = vector.load %arg3[%c0_5, %c0_6] : memref<1x128xf32, #tpu.memory_space<vmem>>, vector<1x128xf32>
    %cst = arith.constant dense<0.000000e+00> : vector<128x128xf32>
    %7 = tpu.matmul %0, %4, %cst {dimension_numbers = #tpu.dot_dimension_numbers<[1], [0], [0], [1], [0, 0, 1, 1], [], []>} : vector<128x128xbf16>, vector<128x128xbf16>, vector<128x128xf32> -> vector<128x128xf32>
    %8 = arith.truncf %7 : vector<128x128xf32> to vector<128x128xbf16>
    %cst_7 = arith.constant dense<0.000000e+00> : vector<128x128xf32>
    %9 = tpu.matmul %8, %5, %cst_7 {dimension_numbers = #tpu.dot_dimension_numbers<[1], [0], [0], [1], [0, 0, 1, 1], [], []>} : vector<128x128xbf16>, vector<128x128xbf16>, vector<128x128xf32> -> vector<128x128xf32>
    %10 = vector.broadcast %6 : vector<1x128xf32> to vector<128x128xf32>
    %11 = arith.addf %9, %10 : vector<128x128xf32>
    %cst_8 = arith.constant 5.000000e-01 : f32
    %12 = vector.broadcast %cst_8 : f32 to vector<128x128xf32>
    %13 = arith.mulf %12, %11 : vector<128x128xf32>
    %cst_9 = arith.constant 0.707106769 : f32
    %14 = vector.broadcast %cst_9 : f32 to vector<128x128xf32>
    %15 = arith.mulf %11, %14 : vector<128x128xf32>
    %16 = math.erf %15 : vector<128x128xf32>
    %cst_10 = arith.constant 1.000000e+00 : f32
    %17 = vector.broadcast %cst_10 : f32 to vector<128x128xf32>
    %18 = arith.addf %17, %16 : vector<128x128xf32>
    %19 = arith.mulf %13, %18 : vector<128x128xf32>
    %20 = arith.truncf %19 : vector<128x128xf32> to vector<128x128xbf16>
    %c0_11 = arith.constant 0 : index
    %c0_12 = arith.constant 0 : index
    %21 = vector.load %arg7[%c0_11, %c0_12] : memref<128x128xbf16, #tpu.memory_space<vmem>>, vector<128x128xbf16>
    tpu.vector_store %arg7[%c0_11, %c0_12], %20 {strides = array<i32>} : memref<128x128xbf16, #tpu.memory_space<vmem>>, vector<128x128xbf16>,
    %c0_i32 = arith.constant 0 : i32
    %c0_13 = arith.constant 0 : index
    %c0_14 = arith.constant 0 : index
    %22 = vector.load %arg7[%c0_13, %c0_14] : memref<128x128xbf16, #tpu.memory_space<vmem>>, vector<128x128xbf16>
    %23 = arith.index_cast %c0_i32 : i32 to index
    %c0_15 = arith.constant 0 : index
    %c0_16 = arith.constant 0 : index
    %24 = vector.load %arg4[%23, %c0_15, %c0_16] : memref<2x128x128xbf16, #tpu.memory_space<vmem>>, vector<1x128x128xbf16>
    %25 = vector.shape_cast %24 : vector<1x128x128xbf16> to vector<128x128xbf16>
    %26 = arith.index_cast %c0_i32 : i32 to index
    %c0_17 = arith.constant 0 : index
    %c0_18 = arith.constant 0 : index
    %27 = vector.load %arg5[%26, %c0_17, %c0_18] : memref<2x1x128xf32, #tpu.memory_space<vmem>>, vector<1x1x128xf32>
    %28 = vector.shape_cast %27 : vector<1x1x128xf32> to vector<1x128xf32>
    %cst_19 = arith.constant dense<0.000000e+00> : vector<128x128xf32>
    %29 = tpu.matmul %0, %22, %cst_19 {dimension_numbers = #tpu.dot_dimension_numbers<[1], [0], [0], [1], [0, 0, 1, 1], [], []>} : vector<128x128xbf16>, vector<128x128xbf16>, vector<128x128xf32> -> vector<128x128xf32>
    %30 = arith.truncf %29 : vector<128x128xf32> to vector<128x128xbf16>
    %cst_20 = arith.constant dense<0.000000e+00> : vector<128x128xf32>
    %31 = tpu.matmul %30, %25, %cst_20 {dimension_numbers = #tpu.dot_dimension_numbers<[1], [0], [0], [1], [0, 0, 1, 1], [], []>} : vector<128x128xbf16>, vector<128x128xbf16>, vector<128x128xf32> -> vector<128x128xf32>
    %32 = vector.broadcast %28 : vector<1x128xf32> to vector<128x128xf32>
    %33 = arith.addf %31, %32 : vector<128x128xf32>
    %cst_21 = arith.constant 5.000000e-01 : f32
    %34 = vector.broadcast %cst_21 : f32 to vector<128x128xf32>
    %35 = arith.mulf %34, %33 : vector<128x128xf32>
    %cst_22 = arith.constant 0.707106769 : f32
    %36 = vector.broadcast %cst_22 : f32 to vector<128x128xf32>
    %37 = arith.mulf %33, %36 : vector<128x128xf32>
    %38 = math.erf %37 : vector<128x128xf32>
    %cst_23 = arith.constant 1.000000e+00 : f32
    %39 = vector.broadcast %cst_23 : f32 to vector<128x128xf32>
    %40 = arith.addf %39, %38 : vector<128x128xf32>
    %41 = arith.mulf %35, %40 : vector<128x128xf32>
    %42 = arith.truncf %41 : vector<128x128xf32> to vector<128x128xbf16>
    %c0_24 = arith.constant 0 : index
    %c0_25 = arith.constant 0 : index
    %43 = vector.load %arg7[%c0_24, %c0_25] : memref<128x128xbf16, #tpu.memory_space<vmem>>, vector<128x128xbf16>
    tpu.vector_store %arg7[%c0_24, %c0_25], %42 {strides = array<i32>} : memref<128x128xbf16, #tpu.memory_space<vmem>>, vector<128x128xbf16>,
    %c1_i32 = arith.constant 1 : i32
    %c0_26 = arith.constant 0 : index
    %c0_27 = arith.constant 0 : index
    %44 = vector.load %arg7[%c0_26, %c0_27] : memref<128x128xbf16, #tpu.memory_space<vmem>>, vector<128x128xbf16>
    %c1 = arith.constant 1 : index
    %c0_28 = arith.constant 0 : index
    %c0_29 = arith.constant 0 : index
    %45 = vector.load %arg4[%c1, %c0_28, %c0_29] : memref<2x128x128xbf16, #tpu.memory_space<vmem>>, vector<1x128x128xbf16>
    %46 = vector.shape_cast %45 : vector<1x128x128xbf16> to vector<128x128xbf16>
    %c1_30 = arith.constant 1 : index
    %c0_31 = arith.constant 0 : index
    %c0_32 = arith.constant 0 : index
    %47 = vector.load %arg5[%c1_30, %c0_31, %c0_32] : memref<2x1x128xf32, #tpu.memory_space<vmem>>, vector<1x1x128xf32>
    %48 = vector.shape_cast %47 : vector<1x1x128xf32> to vector<1x128xf32>
    %cst_33 = arith.constant dense<0.000000e+00> : vector<128x128xf32>
    %49 = tpu.matmul %0, %44, %cst_33 {dimension_numbers = #tpu.dot_dimension_numbers<[1], [0], [0], [1], [0, 0, 1, 1], [], []>} : vector<128x128xbf16>, vector<128x128xbf16>, vector<128x128xf32> -> vector<128x128xf32>
    %50 = arith.truncf %49 : vector<128x128xf32> to vector<128x128xbf16>
    %cst_34 = arith.constant dense<0.000000e+00> : vector<128x128xf32>
    %51 = tpu.matmul %50, %46, %cst_34 {dimension_numbers = #tpu.dot_dimension_numbers<[1], [0], [0], [1], [0, 0, 1, 1], [], []>} : vector<128x128xbf16>, vector<128x128xbf16>, vector<128x128xf32> -> vector<128x128xf32>
    %52 = vector.broadcast %48 : vector<1x128xf32> to vector<128x128xf32>
    %53 = arith.addf %51, %52 : vector<128x128xf32>
    %cst_35 = arith.constant 5.000000e-01 : f32
    %54 = vector.broadcast %cst_35 : f32 to vector<128x128xf32>
    %55 = arith.mulf %54, %53 : vector<128x128xf32>
    %cst_36 = arith.constant 0.707106769 : f32
    %56 = vector.broadcast %cst_36 : f32 to vector<128x128xf32>
    %57 = arith.mulf %53, %56 : vector<128x128xf32>
    %58 = math.erf %57 : vector<128x128xf32>
    %cst_37 = arith.constant 1.000000e+00 : f32
    %59 = vector.broadcast %cst_37 : f32 to vector<128x128xf32>
    %60 = arith.addf %59, %58 : vector<128x128xf32>
    %61 = arith.mulf %55, %60 : vector<128x128xf32>
    %cst_38 = arith.constant 0.000000e+00 : f32
    %62 = vector.shape_cast %3 : vector<128x1xi1> to vector<128x1xi1>
    %63 = vector.broadcast %62 : vector<128x1xi1> to vector<128x128xi1>
    %64 = vector.broadcast %cst_38 : f32 to vector<128x128xf32>
    %65 = arith.select %63, %61, %64 : vector<128x128xi1>, vector<128x128xf32>
    %c0_39 = arith.constant 0 : index
    %c0_40 = arith.constant 0 : index
    %66 = vector.load %arg6[%c0_39, %c0_40] : memref<128x128xf32, #tpu.memory_space<vmem>>, vector<128x128xf32>
    tpu.vector_store %arg6[%c0_39, %c0_40], %65 {strides = array<i32>} : memref<128x128xf32, #tpu.memory_space<vmem>>, vector<128x128xf32>,
    return
  }
}

</mosaic_0001>

<llo_original>
// kernel: _lambda_.1
$region0: #{_lambda_.1}
  #allocation0 [shape = 'u32[]', space=smem, size = 0x4, offset = 0x4, fixed_abs, tag = 'smem constant byte address 0x4 - core index']
  #allocation1 [shape = 'u32[144,128]{1,0:T(1,128)}', space=vmem, size = 0x12000, scoped, tag = 'internal scratch']
  #allocation2 [shape = 'bf16[128,128]{1,0:T(16,128)(2,1)}', space=vmem, size = 0x8000, scoped, tag = 'scratch operand']
  %s0 = inlined_call_operand.vmem [shape: bf16[128,128], index: 0, kind: input, shape index: {}]
  %s1 = inlined_call_operand.vmem [shape: bf16[128,128], index: 1, kind: input, shape index: {}]
  %s2 = inlined_call_operand.vmem [shape: bf16[128,128], index: 2, kind: input, shape index: {}]
  %s3 = inlined_call_operand.vmem [shape: f32[1,128], index: 3, kind: input, shape index: {}]
  %s4 = inlined_call_operand.vmem [shape: bf16[2,128,128], index: 4, kind: input, shape index: {}]
  %s5 = inlined_call_operand.vmem [shape: f32[2,1,128], index: 5, kind: input, shape index: {}]
  %s6 = inlined_call_operand.vmem [shape: f32[128,128], index: 6, kind: output, shape index: {}]
  %s7 = sld [smem:[#allocation0]]
  $region34: #{_lambda_.1} parent=0
    _
  %s9 = ssub.s32 1, %s7
  %s10 = scalar_select 0, %s9, %s7
  // Predicated region
  $region2: #{_lambda_.1} parent=0 // pred_check
    _
  $region3: #{_lambda_.1} parent=0 // pred_check_branch
    %12 = sbr.rel (0) target = $region5
  $region4: #{_lambda_.1} parent=0 // pred_region
    _
  $region5: #{_lambda_.1} parent=0 // pred_fallthru
    _
  // Predicated region
  $region6: #{_lambda_.1} parent=0 // pred_check
    _
  $region7: #{_lambda_.1} parent=0 // pred_check_branch
    %14 = sbr.rel (0) target = $region9
  $region8: #{_lambda_.1} parent=0 // pred_region
    _
  $region9: #{_lambda_.1} parent=0 // pred_fallthru
    _
  // Predicated region
  $region10: #{_lambda_.1} parent=0 // pred_check
    _
  $region11: #{_lambda_.1} parent=0 // pred_check_branch
    %16 = sbr.rel (0) target = $region13
  $region12: #{_lambda_.1} parent=0 // pred_region
    _
  $region13: #{_lambda_.1} parent=0 // pred_fallthru
    _
  // Predicated region
  $region14: #{_lambda_.1} parent=0 // pred_check
    _
  $region15: #{_lambda_.1} parent=0 // pred_check_branch
    %18 = sbr.rel (0) target = $region17
  $region16: #{_lambda_.1} parent=0 // pred_region
    _
  $region17: #{_lambda_.1} parent=0 // pred_fallthru
    _
  // Predicated region
  $region18: #{_lambda_.1} parent=0 // pred_check
    _
  $region19: #{_lambda_.1} parent=0 // pred_check_branch
    %20 = sbr.rel (0) target = $region21
  $region20: #{_lambda_.1} parent=0 // pred_region
    _
  $region21: #{_lambda_.1} parent=0 // pred_fallthru
    _
  // Predicated region
  $region22: #{_lambda_.1} parent=0 // pred_check
    _
  $region23: #{_lambda_.1} parent=0 // pred_check_branch
    %22 = sbr.rel (0) target = $region25
  $region24: #{_lambda_.1} parent=0 // pred_region
    _
  $region25: #{_lambda_.1} parent=0 // pred_fallthru
    _
  %v24 = vld [vmem:[%s0] sm:$0xf]
  %v25 = vld [vmem:[%s0 + $0x4] sm:$0xf]
  %v26 = vld [vmem:[%s0 + $0x8] sm:$0xf]
  %v27 = vld [vmem:[%s0 + $0xc] sm:$0xf]
  %v28 = vld [vmem:[%s0 + $0x10] sm:$0xf]
  %v29 = vld [vmem:[%s0 + $0x14] sm:$0xf]
  %v30 = vld [vmem:[%s0 + $0x18] sm:$0xf]
  %v31 = vld [vmem:[%s0 + $0x1c] sm:$0xf]
  %v32 = vld [vmem:[%s0 + $0x20] sm:$0xf]
  %v33 = vld [vmem:[%s0 + $0x24] sm:$0xf]
  %v34 = vld [vmem:[%s0 + $0x28] sm:$0xf]
  %v35 = vld [vmem:[%s0 + $0x2c] sm:$0xf]
  %v36 = vld [vmem:[%s0 + $0x30] sm:$0xf]
  %v37 = vld [vmem:[%s0 + $0x34] sm:$0xf]
  %v38 = vld [vmem:[%s0 + $0x38] sm:$0xf]
  %v39 = vld [vmem:[%s0 + $0x3c] sm:$0xf]
  %v40 = vlaneseq
  %v41 = vshrl.u32 %v40, 7
  %v42 = vadd.s32 %v41, 8
  %v43 = vadd.s32 %v41, 16
  %v44 = vadd.s32 %v41, 24
  %v45 = vadd.s32 %v41, 32
  %v46 = vadd.s32 %v41, 40
  %v47 = vadd.s32 %v41, 48
  %v48 = vadd.s32 %v41, 56
  %v49 = vadd.s32 %v41, 64
  %v50 = vadd.s32 %v41, 72
  %v51 = vadd.s32 %v41, 80
  %v52 = vadd.s32 %v41, 88
  %v53 = vadd.s32 %v41, 96
  %v54 = vadd.s32 %v41, 104
  %v55 = vadd.s32 %v41, 112
  %v56 = vadd.s32 %v41, 120
  %vm57 = vcmp.lt.s32.totalorder %v41, 16
  %vm58 = vcmp.lt.s32.totalorder %v42, 16
  %vm59 = vcmp.lt.s32.totalorder %v43, 16
  %vm60 = vcmp.lt.s32.totalorder %v44, 16
  %vm61 = vcmp.lt.s32.totalorder %v45, 16
  %vm62 = vcmp.lt.s32.totalorder %v46, 16
  %vm63 = vcmp.lt.s32.totalorder %v47, 16
  %vm64 = vcmp.lt.s32.totalorder %v48, 16
  %vm65 = vcmp.lt.s32.totalorder %v49, 16
  %vm66 = vcmp.lt.s32.totalorder %v50, 16
  %vm67 = vcmp.lt.s32.totalorder %v51, 16
  %vm68 = vcmp.lt.s32.totalorder %v52, 16
  %vm69 = vcmp.lt.s32.totalorder %v53, 16
  %vm70 = vcmp.lt.s32.totalorder %v54, 16
  %vm71 = vcmp.lt.s32.totalorder %v55, 16
  %vm72 = vcmp.lt.s32.totalorder %v56, 16
  %v73 = vld [vmem:[%s1] sm:$0xf]
  %v74 = vld [vmem:[%s1 + $0x4] sm:$0xf]
  %v75 = vld [vmem:[%s1 + $0x8] sm:$0xf]
  %v76 = vld [vmem:[%s1 + $0xc] sm:$0xf]
  %v77 = vld [vmem:[%s1 + $0x10] sm:$0xf]
  %v78 = vld [vmem:[%s1 + $0x14] sm:$0xf]
  %v79 = vld [vmem:[%s1 + $0x18] sm:$0xf]
  %v80 = vld [vmem:[%s1 + $0x1c] sm:$0xf]
  %v81 = vld [vmem:[%s1 + $0x20] sm:$0xf]
  %v82 = vld [vmem:[%s1 + $0x24] sm:$0xf]
  %v83 = vld [vmem:[%s1 + $0x28] sm:$0xf]
  %v84 = vld [vmem:[%s1 + $0x2c] sm:$0xf]
  %v85 = vld [vmem:[%s1 + $0x30] sm:$0xf]
  %v86 = vld [vmem:[%s1 + $0x34] sm:$0xf]
  %v87 = vld [vmem:[%s1 + $0x38] sm:$0xf]
  %v88 = vld [vmem:[%s1 + $0x3c] sm:$0xf]
  %v89 = vld [vmem:[%s2] sm:$0xf]
  %v90 = vld [vmem:[%s2 + $0x4] sm:$0xf]
  %v91 = vld [vmem:[%s2 + $0x8] sm:$0xf]
  %v92 = vld [vmem:[%s2 + $0xc] sm:$0xf]
  %v93 = vld [vmem:[%s2 + $0x10] sm:$0xf]
  %v94 = vld [vmem:[%s2 + $0x14] sm:$0xf]
  %v95 = vld [vmem:[%s2 + $0x18] sm:$0xf]
  %v96 = vld [vmem:[%s2 + $0x1c] sm:$0xf]
  %v97 = vld [vmem:[%s2 + $0x20] sm:$0xf]
  %v98 = vld [vmem:[%s2 + $0x24] sm:$0xf]
  %v99 = vld [vmem:[%s2 + $0x28] sm:$0xf]
  %v100 = vld [vmem:[%s2 + $0x2c] sm:$0xf]
  %v101 = vld [vmem:[%s2 + $0x30] sm:$0xf]
  %v102 = vld [vmem:[%s2 + $0x34] sm:$0xf]
  %v103 = vld [vmem:[%s2 + $0x38] sm:$0xf]
  %v104 = vld [vmem:[%s2 + $0x3c] sm:$0xf]
  %v105 = vld [vmem:[%s3] sm:$0x1]
  %v122 = vunpack.c.l.b16 %v24
  %v123 = vunpack.c.l.b16 %v25
  %v124 = vunpack.c.l.b16 %v26
  %v125 = vunpack.c.l.b16 %v27
  %v126 = vunpack.c.l.b16 %v28
  %v127 = vunpack.c.l.b16 %v29
  %v128 = vunpack.c.l.b16 %v30
  %v129 = vunpack.c.l.b16 %v31
  %v130 = vunpack.c.l.b16 %v32
  %v131 = vunpack.c.l.b16 %v33
  %v132 = vunpack.c.l.b16 %v34
  %v133 = vunpack.c.l.b16 %v35
  %v134 = vunpack.c.l.b16 %v36
  %v135 = vunpack.c.l.b16 %v37
  %v136 = vunpack.c.l.b16 %v38
  %v137 = vunpack.c.l.b16 %v39
  %v138 = vpack.c.b16 %v123, %v122
  %v139 = vpack.c.b16 %v125, %v124
  %v140 = vpack.c.b16 %v127, %v126
  %v141 = vpack.c.b16 %v129, %v128
  %v142 = vpack.c.b16 %v131, %v130
  %v143 = vpack.c.b16 %v133, %v132
  %v144 = vpack.c.b16 %v135, %v134
  %v145 = vpack.c.b16 %v137, %v136
  %v170 = vunpack.c.l.b16 %v73
  %v171 = vunpack.c.l.b16 %v74
  %v172 = vunpack.c.l.b16 %v75
  %v173 = vunpack.c.l.b16 %v76
  %v174 = vunpack.c.l.b16 %v77
  %v175 = vunpack.c.l.b16 %v78
  %v176 = vunpack.c.l.b16 %v79
  %v177 = vunpack.c.l.b16 %v80
  %v178 = vunpack.c.l.b16 %v81
  %v179 = vunpack.c.l.b16 %v82
  %v180 = vunpack.c.l.b16 %v83
  %v181 = vunpack.c.l.b16 %v84
  %v182 = vunpack.c.l.b16 %v85
  %v183 = vunpack.c.l.b16 %v86
  %v184 = vunpack.c.l.b16 %v87
  %v185 = vunpack.c.l.b16 %v88
  %v186 = vpack.c.b16 %v171, %v170
  %v187 = vpack.c.b16 %v173, %v172
  %v188 = vpack.c.b16 %v175, %v174
  %v189 = vpack.c.b16 %v177, %v176
  %v190 = vpack.c.b16 %v179, %v178
  %v191 = vpack.c.b16 %v181, %v180
  %v192 = vpack.c.b16 %v183, %v182
  %v193 = vpack.c.b16 %v185, %v184
  %202 = vmatprep.subr.bf16.mxu0 0
  %203 = vmatpush1.bf16.msra.mxu0 %v186
  %204 = vmatprep.subr.bf16.mxu0 0
  %205 = vmatpush1.bf16.msra.mxu0 %v187
  %206 = vmatprep.subr.bf16.mxu0 0
  %207 = vmatpush1.bf16.msra.mxu0 %v188
  %208 = vmatprep.subr.bf16.mxu0 0
  %209 = vmatpush1.bf16.msra.mxu0 %v189
  %210 = vmatprep.subr.bf16.mxu0 0
  %211 = vmatpush1.bf16.msra.mxu0 %v190
  %212 = vmatprep.subr.bf16.mxu0 0
  %213 = vmatpush1.bf16.msra.mxu0 %v191
  %214 = vmatprep.subr.bf16.mxu0 0
  %215 = vmatpush1.bf16.msra.mxu0 %v192
  %216 = vmatprep.subr.bf16.mxu0 0
  %217 = vmatpush1.bf16.msra.mxu0 %v193
  %218 = vmatprep.subr.bf16.mxu0 0
  %219 = vmatpush1.bf16.msra.mxu0 0
  %220 = vmatprep.subr.bf16.mxu0 0
  %221 = vmatpush1.bf16.msra.mxu0 0
  %222 = vmatprep.subr.bf16.mxu0 0
  %223 = vmatpush1.bf16.msra.mxu0 0
  %224 = vmatprep.subr.bf16.mxu0 0
  %225 = vmatpush1.bf16.msra.mxu0 0
  %226 = vmatprep.subr.bf16.mxu0 0
  %227 = vmatpush1.bf16.msra.mxu0 0
  %228 = vmatprep.subr.bf16.mxu0 0
  %229 = vmatpush1.bf16.msra.mxu0 0
  %230 = vmatprep.subr.bf16.mxu0 0
  %231 = vmatpush1.bf16.msra.mxu0 0
  %232 = vmatprep.subr.bf16.mxu0 0
  %233 = vmatpush1.bf16.msra.mxu0 0
  %234 = vmatprep.mubr.bf16.mxu0 0
  %235 = vmatmul.mubr.bf16.gmra.mrb[0].mxu0 %v138
  %v236 = vpop.f32.mrb[0].mxu0
  %v237 = vadd.f32 0.0, %v236
  %v238 = vpop.f32.mrb[0].mxu0
  %v239 = vpop.f32.mrb[0].mxu0
  %v240 = vadd.f32 0.0, %v239
  %v241 = vpop.f32.mrb[0].mxu0
  %242 = vmatprep.mubr.bf16.mxu0 0
  %243 = vmatmul.mubr.bf16.gmra.mrb[0].mxu0 %v139
  %v244 = vpop.f32.mrb[0].mxu0
  %v245 = vadd.f32 0.0, %v244
  %v246 = vpop.f32.mrb[0].mxu0
  %v247 = vpop.f32.mrb[0].mxu0
  %v248 = vadd.f32 0.0, %v247
  %v249 = vpop.f32.mrb[0].mxu0
  %250 = vmatprep.mubr.bf16.mxu0 0
  %251 = vmatmul.mubr.bf16.gmra.mrb[0].mxu0 %v140
  %v252 = vpop.f32.mrb[0].mxu0
  %v253 = vadd.f32 0.0, %v252
  %v254 = vpop.f32.mrb[0].mxu0
  %v255 = vpop.f32.mrb[0].mxu0
  %v256 = vadd.f32 0.0, %v255
  %v257 = vpop.f32.mrb[0].mxu0
  %258 = vmatprep.mubr.bf16.mxu0 0
  %259 = vmatmul.mubr.bf16.gmra.mrb[0].mxu0 %v141
  %v260 = vpop.f32.mrb[0].mxu0
  %v261 = vadd.f32 0.0, %v260
  %v262 = vpop.f32.mrb[0].mxu0
  %v263 = vpop.f32.mrb[0].mxu0
  %v264 = vadd.f32 0.0, %v263
  %v265 = vpop.f32.mrb[0].mxu0
  %266 = vmatprep.mubr.bf16.mxu0 0
  %267 = vmatmul.mubr.bf16.gmra.mrb[0].mxu0 %v142
  %v268 = vpop.f32.mrb[0].mxu0
  %v269 = vadd.f32 0.0, %v268
  %v270 = vpop.f32.mrb[0].mxu0
  %v271 = vpop.f32.mrb[0].mxu0
  %v272 = vadd.f32 0.0, %v271
  %v273 = vpop.f32.mrb[0].mxu0
  %274 = vmatprep.mubr.bf16.mxu0 0
  %275 = vmatmul.mubr.bf16.gmra.mrb[0].mxu0 %v143
  %v276 = vpop.f32.mrb[0].mxu0
  %v277 = vadd.f32 0.0, %v276
  %v278 = vpop.f32.mrb[0].mxu0
  %v279 = vpop.f32.mrb[0].mxu0
  %v280 = vadd.f32 0.0, %v279
  %v281 = vpop.f32.mrb[0].mxu0
  %282 = vmatprep.mubr.bf16.mxu0 0
  %283 = vmatmul.mubr.bf16.gmra.mrb[0].mxu0 %v144
  %v284 = vpop.f32.mrb[0].mxu0
  %v285 = vadd.f32 0.0, %v284
  %v286 = vpop.f32.mrb[0].mxu0
  %v287 = vpop.f32.mrb[0].mxu0
  %v288 = vadd.f32 0.0, %v287
  %v289 = vpop.f32.mrb[0].mxu0
  %290 = vmatprep.mubr.bf16.mxu0 0
  %291 = vmatmul.mubr.bf16.gmra.mrb[0].mxu0 %v145
  %v292 = vpop.f32.mrb[0].mxu0
  %v293 = vadd.f32 0.0, %v292
  %v294 = vpop.f32.mrb[0].mxu0
  %v295 = vpop.f32.mrb[0].mxu0
  %v296 = vadd.f32 0.0, %v295
  %v297 = vpop.f32.mrb[0].mxu0
  %298 = vdwg.mxu0
  %v299 = vpack.c.bf16 %v240, %v237
  %v300 = vpack.c.bf16 %v248, %v245
  %v301 = vpack.c.bf16 %v256, %v253
  %v302 = vpack.c.bf16 %v264, %v261
  %v303 = vpack.c.bf16 %v272, %v269
  %v304 = vpack.c.bf16 %v280, %v277
  %v305 = vpack.c.bf16 %v288, %v285
  %v306 = vpack.c.bf16 %v296, %v293
  %v308 = vlaneseq
  %v309 = vshrl.u32 %v308, 7
  %v310 = vsub.s32 0, %v309
  %v311 = vrot.slane %v105, %v310
  %v329 = vunpack.c.l.b16 %v89
  %v330 = vunpack.c.l.b16 %v90
  %v331 = vunpack.c.l.b16 %v91
  %v332 = vunpack.c.l.b16 %v92
  %v333 = vunpack.c.l.b16 %v93
  %v334 = vunpack.c.l.b16 %v94
  %v335 = vunpack.c.l.b16 %v95
  %v336 = vunpack.c.l.b16 %v96
  %v337 = vunpack.c.l.b16 %v97
  %v338 = vunpack.c.l.b16 %v98
  %v339 = vunpack.c.l.b16 %v99
  %v340 = vunpack.c.l.b16 %v100
  %v341 = vunpack.c.l.b16 %v101
  %v342 = vunpack.c.l.b16 %v102
  %v343 = vunpack.c.l.b16 %v103
  %v344 = vunpack.c.l.b16 %v104
  %v345 = vpack.c.b16 %v330, %v329
  %v346 = vpack.c.b16 %v332, %v331
  %v347 = vpack.c.b16 %v334, %v333
  %v348 = vpack.c.b16 %v336, %v335
  %v349 = vpack.c.b16 %v338, %v337
  %v350 = vpack.c.b16 %v340, %v339
  %v351 = vpack.c.b16 %v342, %v341
  %v352 = vpack.c.b16 %v344, %v343
  %361 = vmatprep.subr.bf16.mxu0 0
  %362 = vmatpush1.bf16.msra.mxu0 %v345
  %363 = vmatprep.subr.bf16.mxu0 0
  %364 = vmatpush1.bf16.msra.mxu0 %v346
  %365 = vmatprep.subr.bf16.mxu0 0
  %366 = vmatpush1.bf16.msra.mxu0 %v347
  %367 = vmatprep.subr.bf16.mxu0 0
  %368 = vmatpush1.bf16.msra.mxu0 %v348
  %369 = vmatprep.subr.bf16.mxu0 0
  %370 = vmatpush1.bf16.msra.mxu0 %v349
  %371 = vmatprep.subr.bf16.mxu0 0
  %372 = vmatpush1.bf16.msra.mxu0 %v350
  %373 = vmatprep.subr.bf16.mxu0 0
  %374 = vmatpush1.bf16.msra.mxu0 %v351
  %375 = vmatprep.subr.bf16.mxu0 0
  %376 = vmatpush1.bf16.msra.mxu0 %v352
  %377 = vmatprep.subr.bf16.mxu0 0
  %378 = vmatpush1.bf16.msra.mxu0 0
  %379 = vmatprep.subr.bf16.mxu0 0
  %380 = vmatpush1.bf16.msra.mxu0 0
  %381 = vmatprep.subr.bf16.mxu0 0
  %382 = vmatpush1.bf16.msra.mxu0 0
  %383 = vmatprep.subr.bf16.mxu0 0
  %384 = vmatpush1.bf16.msra.mxu0 0
  %385 = vmatprep.subr.bf16.mxu0 0
  %386 = vmatpush1.bf16.msra.mxu0 0
  %387 = vmatprep.subr.bf16.mxu0 0
  %388 = vmatpush1.bf16.msra.mxu0 0
  %389 = vmatprep.subr.bf16.mxu0 0
  %390 = vmatpush1.bf16.msra.mxu0 0
  %391 = vmatprep.subr.bf16.mxu0 0
  %392 = vmatpush1.bf16.msra.mxu0 0
  %393 = vmatprep.mubr.bf16.mxu0 0
  %394 = vmatmul.mubr.bf16.gmra.mrb[0].mxu0 %v299
  %v395 = vpop.f32.mrb[0].mxu0
  %v396 = vadd.f32 %v311, %v395
  %v397 = vpop.f32.mrb[0].mxu0
  %v398 = vpop.f32.mrb[0].mxu0
  %v399 = vadd.f32 %v311, %v398
  %v400 = vpop.f32.mrb[0].mxu0
  %401 = vmatprep.mubr.bf16.mxu0 0
  %402 = vmatmul.mubr.bf16.gmra.mrb[0].mxu0 %v300
  %v403 = vpop.f32.mrb[0].mxu0
  %v404 = vadd.f32 %v311, %v403
  %v405 = vpop.f32.mrb[0].mxu0
  %v406 = vpop.f32.mrb[0].mxu0
  %v407 = vadd.f32 %v311, %v406
  %v408 = vpop.f32.mrb[0].mxu0
  %409 = vmatprep.mubr.bf16.mxu0 0
  %410 = vmatmul.mubr.bf16.gmra.mrb[0].mxu0 %v301
  %v411 = vpop.f32.mrb[0].mxu0
  %v412 = vadd.f32 %v311, %v411
  %v413 = vpop.f32.mrb[0].mxu0
  %v414 = vpop.f32.mrb[0].mxu0
  %v415 = vadd.f32 %v311, %v414
  %v416 = vpop.f32.mrb[0].mxu0
  %417 = vmatprep.mubr.bf16.mxu0 0
  %418 = vmatmul.mubr.bf16.gmra.mrb[0].mxu0 %v302
  %v419 = vpop.f32.mrb[0].mxu0
  %v420 = vadd.f32 %v311, %v419
  %v421 = vpop.f32.mrb[0].mxu0
  %v422 = vpop.f32.mrb[0].mxu0
  %v423 = vadd.f32 %v311, %v422
  %v424 = vpop.f32.mrb[0].mxu0
  %425 = vmatprep.mubr.bf16.mxu0 0
  %426 = vmatmul.mubr.bf16.gmra.mrb[0].mxu0 %v303
  %v427 = vpop.f32.mrb[0].mxu0
  %v428 = vadd.f32 %v311, %v427
  %v429 = vpop.f32.mrb[0].mxu0
  %v430 = vpop.f32.mrb[0].mxu0
  %v431 = vadd.f32 %v311, %v430
  %v432 = vpop.f32.mrb[0].mxu0
  %433 = vmatprep.mubr.bf16.mxu0 0
  %434 = vmatmul.mubr.bf16.gmra.mrb[0].mxu0 %v304
  %v435 = vpop.f32.mrb[0].mxu0
  %v436 = vadd.f32 %v311, %v435
  %v437 = vpop.f32.mrb[0].mxu0
  %v438 = vpop.f32.mrb[0].mxu0
  %v439 = vadd.f32 %v311, %v438
  %v440 = vpop.f32.mrb[0].mxu0
  %441 = vmatprep.mubr.bf16.mxu0 0
  %442 = vmatmul.mubr.bf16.gmra.mrb[0].mxu0 %v305
  %v443 = vpop.f32.mrb[0].mxu0
  %v444 = vadd.f32 %v311, %v443
  %v445 = vpop.f32.mrb[0].mxu0
  %v446 = vpop.f32.mrb[0].mxu0
  %v447 = vadd.f32 %v311, %v446
  %v448 = vpop.f32.mrb[0].mxu0
  %449 = vmatprep.mubr.bf16.mxu0 0
  %450 = vmatmul.mubr.bf16.gmra.mrb[0].mxu0 %v306
  %v451 = vpop.f32.mrb[0].mxu0
  %v452 = vadd.f32 %v311, %v451
  %v453 = vpop.f32.mrb[0].mxu0
  %v454 = vpop.f32.mrb[0].mxu0
  %v455 = vadd.f32 %v311, %v454
  %v456 = vpop.f32.mrb[0].mxu0
  %457 = vdwg.mxu0
  %v458 = vmul.f32 %v396, 0.5
  %v459 = vmul.f32 %v399, 0.5
  %v460 = vmul.f32 %v404, 0.5
  %v461 = vmul.f32 %v407, 0.5
  %v462 = vmul.f32 %v412, 0.5
  %v463 = vmul.f32 %v415, 0.5
  %v464 = vmul.f32 %v420, 0.5
  %v465 = vmul.f32 %v423, 0.5
  %v466 = vmul.f32 %v428, 0.5
  %v467 = vmul.f32 %v431, 0.5
  %v468 = vmul.f32 %v436, 0.5
  %v469 = vmul.f32 %v439, 0.5
  %v470 = vmul.f32 %v444, 0.5
  %v471 = vmul.f32 %v447, 0.5
  %v472 = vmul.f32 %v452, 0.5
  %v473 = vmul.f32 %v455, 0.5
  %v474 = vmul.f32 %v396, 0.70710677
  %v475 = vmul.f32 %v399, 0.70710677
  %v476 = vmul.f32 %v404, 0.70710677
  %v477 = vmul.f32 %v407, 0.70710677
  %v478 = vmul.f32 %v412, 0.70710677
  %v479 = vmul.f32 %v415, 0.70710677
  %v480 = vmul.f32 %v420, 0.70710677
  %v481 = vmul.f32 %v423, 0.70710677
  %v482 = vmul.f32 %v428, 0.70710677
  %v483 = vmul.f32 %v431, 0.70710677
  %v484 = vmul.f32 %v436, 0.70710677
  %v485 = vmul.f32 %v439, 0.70710677
  %v486 = vmul.f32 %v444, 0.70710677
  %v487 = vmul.f32 %v447, 0.70710677
  %v488 = vmul.f32 %v452, 0.70710677
  %v489 = vmul.f32 %v455, 0.70710677
  %v490 = verf.f32.pop %v474
  %v491 = verf.f32.pop %v475
  %v492 = verf.f32.pop %v476
  %v493 = verf.f32.pop %v477
  %v494 = verf.f32.pop %v478
  %v495 = verf.f32.pop %v479
  %v496 = verf.f32.pop %v480
  %v497 = verf.f32.pop %v481
  %v498 = verf.f32.pop %v482
  %v499 = verf.f32.pop %v483
  %v500 = verf.f32.pop %v484
  %v501 = verf.f32.pop %v485
  %v502 = verf.f32.pop %v486
  %v503 = verf.f32.pop %v487
  %v504 = verf.f32.pop %v488
  %v505 = verf.f32.pop %v489
  %v506 = vadd.f32 %v490, 1.0
  %v507 = vadd.f32 %v491, 1.0
  %v508 = vadd.f32 %v492, 1.0
  %v509 = vadd.f32 %v493, 1.0
  %v510 = vadd.f32 %v494, 1.0
  %v511 = vadd.f32 %v495, 1.0
  %v512 = vadd.f32 %v496, 1.0
  %v513 = vadd.f32 %v497, 1.0
  %v514 = vadd.f32 %v498, 1.0
  %v515 = vadd.f32 %v499, 1.0
  %v516 = vadd.f32 %v500, 1.0
  %v517 = vadd.f32 %v501, 1.0
  %v518 = vadd.f32 %v502, 1.0
  %v519 = vadd.f32 %v503, 1.0
  %v520 = vadd.f32 %v504, 1.0
  %v521 = vadd.f32 %v505, 1.0
  %v522 = vmul.f32 %v458, %v506
  %v523 = vmul.f32 %v459, %v507
  %v524 = vmul.f32 %v460, %v508
  %v525 = vmul.f32 %v461, %v509
  %v526 = vmul.f32 %v462, %v510
  %v527 = vmul.f32 %v463, %v511
  %v528 = vmul.f32 %v464, %v512
  %v529 = vmul.f32 %v465, %v513
  %v530 = vmul.f32 %v466, %v514
  %v531 = vmul.f32 %v467, %v515
  %v532 = vmul.f32 %v468, %v516
  %v533 = vmul.f32 %v469, %v517
  %v534 = vmul.f32 %v470, %v518
  %v535 = vmul.f32 %v471, %v519
  %v536 = vmul.f32 %v472, %v520
  %v537 = vmul.f32 %v473, %v521
  %v538 = vpack.c.bf16 %v523, %v522
  %v539 = vpack.c.bf16 %v525, %v524
  %v540 = vpack.c.bf16 %v527, %v526
  %v541 = vpack.c.bf16 %v529, %v528
  %v542 = vpack.c.bf16 %v531, %v530
  %v543 = vpack.c.bf16 %v533, %v532
  %v544 = vpack.c.bf16 %v535, %v534
  %v545 = vpack.c.bf16 %v537, %v536
  %546 = vst [vmem:[#allocation2] sm:$0xff] %v538
  %547 = vst [vmem:[#allocation2 + $0x8] sm:$0xff] %v539
  %548 = vst [vmem:[#allocation2 + $0x10] sm:$0xff] %v540
  %549 = vst [vmem:[#allocation2 + $0x18] sm:$0xff] %v541
  %550 = vst [vmem:[#allocation2 + $0x20] sm:$0xff] %v542
  %551 = vst [vmem:[#allocation2 + $0x28] sm:$0xff] %v543
  %552 = vst [vmem:[#allocation2 + $0x30] sm:$0xff] %v544
  %553 = vst [vmem:[#allocation2 + $0x38] sm:$0xff] %v545
  %v554 = vld [vmem:[#allocation2] sm:$0xff]
  %v555 = vld [vmem:[#allocation2 + $0x8] sm:$0xff]
  %v556 = vld [vmem:[#allocation2 + $0x10] sm:$0xff]
  %v557 = vld [vmem:[#allocation2 + $0x18] sm:$0xff]
  %v558 = vld [vmem:[#allocation2 + $0x20] sm:$0xff]
  %v559 = vld [vmem:[#allocation2 + $0x28] sm:$0xff]
  %v560 = vld [vmem:[#allocation2 + $0x30] sm:$0xff]
  %v561 = vld [vmem:[#allocation2 + $0x38] sm:$0xff]
  %v562 = vld [vmem:[%s4] sm:$0xf]
  %v563 = vld [vmem:[%s4 + $0x4] sm:$0xf]
  %v564 = vld [vmem:[%s4 + $0x8] sm:$0xf]
  %v565 = vld [vmem:[%s4 + $0xc] sm:$0xf]
  %v566 = vld [vmem:[%s4 + $0x10] sm:$0xf]
  %v567 = vld [vmem:[%s4 + $0x14] sm:$0xf]
  %v568 = vld [vmem:[%s4 + $0x18] sm:$0xf]
  %v569 = vld [vmem:[%s4 + $0x1c] sm:$0xf]
  %v570 = vld [vmem:[%s4 + $0x20] sm:$0xf]
  %v571 = vld [vmem:[%s4 + $0x24] sm:$0xf]
  %v572 = vld [vmem:[%s4 + $0x28] sm:$0xf]
  %v573 = vld [vmem:[%s4 + $0x2c] sm:$0xf]
  %v574 = vld [vmem:[%s4 + $0x30] sm:$0xf]
  %v575 = vld [vmem:[%s4 + $0x34] sm:$0xf]
  %v576 = vld [vmem:[%s4 + $0x38] sm:$0xf]
  %v577 = vld [vmem:[%s4 + $0x3c] sm:$0xf]
  %v578 = vld [vmem:[%s5] sm:$0x1]
  %579 = vmatprep.subr.bf16.mxu0 0
  %580 = vmatpush1.bf16.msra.mxu0 %v554
  %581 = vmatprep.subr.bf16.mxu0 0
  %582 = vmatpush1.bf16.msra.mxu0 %v555
  %583 = vmatprep.subr.bf16.mxu0 0
  %584 = vmatpush1.bf16.msra.mxu0 %v556
  %585 = vmatprep.subr.bf16.mxu0 0
  %586 = vmatpush1.bf16.msra.mxu0 %v557
  %587 = vmatprep.subr.bf16.mxu0 0
  %588 = vmatpush1.bf16.msra.mxu0 %v558
  %589 = vmatprep.subr.bf16.mxu0 0
  %590 = vmatpush1.bf16.msra.mxu0 %v559
  %591 = vmatprep.subr.bf16.mxu0 0
  %592 = vmatpush1.bf16.msra.mxu0 %v560
  %593 = vmatprep.subr.bf16.mxu0 0
  %594 = vmatpush1.bf16.msra.mxu0 %v561
  %595 = vmatprep.subr.bf16.mxu0 0
  %596 = vmatpush1.bf16.msra.mxu0 0
  %597 = vmatprep.subr.bf16.mxu0 0
  %598 = vmatpush1.bf16.msra.mxu0 0
  %599 = vmatprep.subr.bf16.mxu0 0
  %600 = vmatpush1.bf16.msra.mxu0 0
  %601 = vmatprep.subr.bf16.mxu0 0
  %602 = vmatpush1.bf16.msra.mxu0 0
  %603 = vmatprep.subr.bf16.mxu0 0
  %604 = vmatpush1.bf16.msra.mxu0 0
  %605 = vmatprep.subr.bf16.mxu0 0
  %606 = vmatpush1.bf16.msra.mxu0 0
  %607 = vmatprep.subr.bf16.mxu0 0
  %608 = vmatpush1.bf16.msra.mxu0 0
  %609 = vmatprep.subr.bf16.mxu0 0
  %610 = vmatpush1.bf16.msra.mxu0 0
  %611 = vmatprep.mubr.bf16.mxu0 0
  %612 = vmatmul.mubr.bf16.gmra.mrb[0].mxu0 %v138
  %v613 = vpop.f32.mrb[0].mxu0
  %v614 = vadd.f32 0.0, %v613
  %v615 = vpop.f32.mrb[0].mxu0
  %v616 = vpop.f32.mrb[0].mxu0
  %v617 = vadd.f32 0.0, %v616
  %v618 = vpop.f32.mrb[0].mxu0
  %619 = vmatprep.mubr.bf16.mxu0 0
  %620 = vmatmul.mubr.bf16.gmra.mrb[0].mxu0 %v139
  %v621 = vpop.f32.mrb[0].mxu0
  %v622 = vadd.f32 0.0, %v621
  %v623 = vpop.f32.mrb[0].mxu0
  %v624 = vpop.f32.mrb[0].mxu0
  %v625 = vadd.f32 0.0, %v624
  %v626 = vpop.f32.mrb[0].mxu0
  %627 = vmatprep.mubr.bf16.mxu0 0
  %628 = vmatmul.mubr.bf16.gmra.mrb[0].mxu0 %v140
  %v629 = vpop.f32.mrb[0].mxu0
  %v630 = vadd.f32 0.0, %v629
  %v631 = vpop.f32.mrb[0].mxu0
  %v632 = vpop.f32.mrb[0].mxu0
  %v633 = vadd.f32 0.0, %v632
  %v634 = vpop.f32.mrb[0].mxu0
  %635 = vmatprep.mubr.bf16.mxu0 0
  %636 = vmatmul.mubr.bf16.gmra.mrb[0].mxu0 %v141
  %v637 = vpop.f32.mrb[0].mxu0
  %v638 = vadd.f32 0.0, %v637
  %v639 = vpop.f32.mrb[0].mxu0
  %v640 = vpop.f32.mrb[0].mxu0
  %v641 = vadd.f32 0.0, %v640
  %v642 = vpop.f32.mrb[0].mxu0
  %643 = vmatprep.mubr.bf16.mxu0 0
  %644 = vmatmul.mubr.bf16.gmra.mrb[0].mxu0 %v142
  %v645 = vpop.f32.mrb[0].mxu0
  %v646 = vadd.f32 0.0, %v645
  %v647 = vpop.f32.mrb[0].mxu0
  %v648 = vpop.f32.mrb[0].mxu0
  %v649 = vadd.f32 0.0, %v648
  %v650 = vpop.f32.mrb[0].mxu0
  %651 = vmatprep.mubr.bf16.mxu0 0
  %652 = vmatmul.mubr.bf16.gmra.mrb[0].mxu0 %v143
  %v653 = vpop.f32.mrb[0].mxu0
  %v654 = vadd.f32 0.0, %v653
  %v655 = vpop.f32.mrb[0].mxu0
  %v656 = vpop.f32.mrb[0].mxu0
  %v657 = vadd.f32 0.0, %v656
  %v658 = vpop.f32.mrb[0].mxu0
  %659 = vmatprep.mubr.bf16.mxu0 0
  %660 = vmatmul.mubr.bf16.gmra.mrb[0].mxu0 %v144
  %v661 = vpop.f32.mrb[0].mxu0
  %v662 = vadd.f32 0.0, %v661
  %v663 = vpop.f32.mrb[0].mxu0
  %v664 = vpop.f32.mrb[0].mxu0
  %v665 = vadd.f32 0.0, %v664
  %v666 = vpop.f32.mrb[0].mxu0
  %667 = vmatprep.mubr.bf16.mxu0 0
  %668 = vmatmul.mubr.bf16.gmra.mrb[0].mxu0 %v145
  %v669 = vpop.f32.mrb[0].mxu0
  %v670 = vadd.f32 0.0, %v669
  %v671 = vpop.f32.mrb[0].mxu0
  %v672 = vpop.f32.mrb[0].mxu0
  %v673 = vadd.f32 0.0, %v672
  %v674 = vpop.f32.mrb[0].mxu0
  %675 = vdwg.mxu0
  %v676 = vpack.c.bf16 %v617, %v614
  %v677 = vpack.c.bf16 %v625, %v622
  %v678 = vpack.c.bf16 %v633, %v630
  %v679 = vpack.c.bf16 %v641, %v638
  %v680 = vpack.c.bf16 %v649, %v646
  %v681 = vpack.c.bf16 %v657, %v654
  %v682 = vpack.c.bf16 %v665, %v662
  %v683 = vpack.c.bf16 %v673, %v670
  %v685 = vlaneseq
  %v686 = vshrl.u32 %v685, 7
  %v687 = vsub.s32 0, %v686
  %v688 = vrot.slane %v578, %v687
  %v706 = vunpack.c.l.b16 %v562
  %v707 = vunpack.c.l.b16 %v563
  %v708 = vunpack.c.l.b16 %v564
  %v709 = vunpack.c.l.b16 %v565
  %v710 = vunpack.c.l.b16 %v566
  %v711 = vunpack.c.l.b16 %v567
  %v712 = vunpack.c.l.b16 %v568
  %v713 = vunpack.c.l.b16 %v569
  %v714 = vunpack.c.l.b16 %v570
  %v715 = vunpack.c.l.b16 %v571
  %v716 = vunpack.c.l.b16 %v572
  %v717 = vunpack.c.l.b16 %v573
  %v718 = vunpack.c.l.b16 %v574
  %v719 = vunpack.c.l.b16 %v575
  %v720 = vunpack.c.l.b16 %v576
  %v721 = vunpack.c.l.b16 %v577
  %v722 = vpack.c.b16 %v707, %v706
  %v723 = vpack.c.b16 %v709, %v708
  %v724 = vpack.c.b16 %v711, %v710
  %v725 = vpack.c.b16 %v713, %v712
  %v726 = vpack.c.b16 %v715, %v714
  %v727 = vpack.c.b16 %v717, %v716
  %v728 = vpack.c.b16 %v719, %v718
  %v729 = vpack.c.b16 %v721, %v720
  %738 = vmatprep.subr.bf16.mxu0 0
  %739 = vmatpush1.bf16.msra.mxu0 %v722
  %740 = vmatprep.subr.bf16.mxu0 0
  %741 = vmatpush1.bf16.msra.mxu0 %v723
  %742 = vmatprep.subr.bf16.mxu0 0
  %743 = vmatpush1.bf16.msra.mxu0 %v724
  %744 = vmatprep.subr.bf16.mxu0 0
  %745 = vmatpush1.bf16.msra.mxu0 %v725
  %746 = vmatprep.subr.bf16.mxu0 0
  %747 = vmatpush1.bf16.msra.mxu0 %v726
  %748 = vmatprep.subr.bf16.mxu0 0
  %749 = vmatpush1.bf16.msra.mxu0 %v727
  %750 = vmatprep.subr.bf16.mxu0 0
  %751 = vmatpush1.bf16.msra.mxu0 %v728
  %752 = vmatprep.subr.bf16.mxu0 0
  %753 = vmatpush1.bf16.msra.mxu0 %v729
  %754 = vmatprep.subr.bf16.mxu0 0
  %755 = vmatpush1.bf16.msra.mxu0 0
  %756 = vmatprep.subr.bf16.mxu0 0
  %757 = vmatpush1.bf16.msra.mxu0 0
  %758 = vmatprep.subr.bf16.mxu0 0
  %759 = vmatpush1.bf16.msra.mxu0 0
  %760 = vmatprep.subr.bf16.mxu0 0
  %761 = vmatpush1.bf16.msra.mxu0 0
  %762 = vmatprep.subr.bf16.mxu0 0
  %763 = vmatpush1.bf16.msra.mxu0 0
  %764 = vmatprep.subr.bf16.mxu0 0
  %765 = vmatpush1.bf16.msra.mxu0 0
  %766 = vmatprep.subr.bf16.mxu0 0
  %767 = vmatpush1.bf16.msra.mxu0 0
  %768 = vmatprep.subr.bf16.mxu0 0
  %769 = vmatpush1.bf16.msra.mxu0 0
  %770 = vmatprep.mubr.bf16.mxu0 0
  %771 = vmatmul.mubr.bf16.gmra.mrb[0].mxu0 %v676
  %v772 = vpop.f32.mrb[0].mxu0
  %v773 = vadd.f32 %v688, %v772
  %v774 = vpop.f32.mrb[0].mxu0
  %v775 = vpop.f32.mrb[0].mxu0
  %v776 = vadd.f32 %v688, %v775
  %v777 = vpop.f32.mrb[0].mxu0
  %778 = vmatprep.mubr.bf16.mxu0 0
  %779 = vmatmul.mubr.bf16.gmra.mrb[0].mxu0 %v677
  %v780 = vpop.f32.mrb[0].mxu0
  %v781 = vadd.f32 %v688, %v780
  %v782 = vpop.f32.mrb[0].mxu0
  %v783 = vpop.f32.mrb[0].mxu0
  %v784 = vadd.f32 %v688, %v783
  %v785 = vpop.f32.mrb[0].mxu0
  %786 = vmatprep.mubr.bf16.mxu0 0
  %787 = vmatmul.mubr.bf16.gmra.mrb[0].mxu0 %v678
  %v788 = vpop.f32.mrb[0].mxu0
  %v789 = vadd.f32 %v688, %v788
  %v790 = vpop.f32.mrb[0].mxu0
  %v791 = vpop.f32.mrb[0].mxu0
  %v792 = vadd.f32 %v688, %v791
  %v793 = vpop.f32.mrb[0].mxu0
  %794 = vmatprep.mubr.bf16.mxu0 0
  %795 = vmatmul.mubr.bf16.gmra.mrb[0].mxu0 %v679
  %v796 = vpop.f32.mrb[0].mxu0
  %v797 = vadd.f32 %v688, %v796
  %v798 = vpop.f32.mrb[0].mxu0
  %v799 = vpop.f32.mrb[0].mxu0
  %v800 = vadd.f32 %v688, %v799
  %v801 = vpop.f32.mrb[0].mxu0
  %802 = vmatprep.mubr.bf16.mxu0 0
  %803 = vmatmul.mubr.bf16.gmra.mrb[0].mxu0 %v680
  %v804 = vpop.f32.mrb[0].mxu0
  %v805 = vadd.f32 %v688, %v804
  %v806 = vpop.f32.mrb[0].mxu0
  %v807 = vpop.f32.mrb[0].mxu0
  %v808 = vadd.f32 %v688, %v807
  %v809 = vpop.f32.mrb[0].mxu0
  %810 = vmatprep.mubr.bf16.mxu0 0
  %811 = vmatmul.mubr.bf16.gmra.mrb[0].mxu0 %v681
  %v812 = vpop.f32.mrb[0].mxu0
  %v813 = vadd.f32 %v688, %v812
  %v814 = vpop.f32.mrb[0].mxu0
  %v815 = vpop.f32.mrb[0].mxu0
  %v816 = vadd.f32 %v688, %v815
  %v817 = vpop.f32.mrb[0].mxu0
  %818 = vmatprep.mubr.bf16.mxu0 0
  %819 = vmatmul.mubr.bf16.gmra.mrb[0].mxu0 %v682
  %v820 = vpop.f32.mrb[0].mxu0
  %v821 = vadd.f32 %v688, %v820
  %v822 = vpop.f32.mrb[0].mxu0
  %v823 = vpop.f32.mrb[0].mxu0
  %v824 = vadd.f32 %v688, %v823
  %v825 = vpop.f32.mrb[0].mxu0
  %826 = vmatprep.mubr.bf16.mxu0 0
  %827 = vmatmul.mubr.bf16.gmra.mrb[0].mxu0 %v683
  %v828 = vpop.f32.mrb[0].mxu0
  %v829 = vadd.f32 %v688, %v828
  %v830 = vpop.f32.mrb[0].mxu0
  %v831 = vpop.f32.mrb[0].mxu0
  %v832 = vadd.f32 %v688, %v831
  %v833 = vpop.f32.mrb[0].mxu0
  %834 = vdwg.mxu0
  %v835 = vmul.f32 %v773, 0.5
  %v836 = vmul.f32 %v776, 0.5
  %v837 = vmul.f32 %v781, 0.5
  %v838 = vmul.f32 %v784, 0.5
  %v839 = vmul.f32 %v789, 0.5
  %v840 = vmul.f32 %v792, 0.5
  %v841 = vmul.f32 %v797, 0.5
  %v842 = vmul.f32 %v800, 0.5
  %v843 = vmul.f32 %v805, 0.5
  %v844 = vmul.f32 %v808, 0.5
  %v845 = vmul.f32 %v813, 0.5
  %v846 = vmul.f32 %v816, 0.5
  %v847 = vmul.f32 %v821, 0.5
  %v848 = vmul.f32 %v824, 0.5
  %v849 = vmul.f32 %v829, 0.5
  %v850 = vmul.f32 %v832, 0.5
  %v851 = vmul.f32 %v773, 0.70710677
  %v852 = vmul.f32 %v776, 0.70710677
  %v853 = vmul.f32 %v781, 0.70710677
  %v854 = vmul.f32 %v784, 0.70710677
  %v855 = vmul.f32 %v789, 0.70710677
  %v856 = vmul.f32 %v792, 0.70710677
  %v857 = vmul.f32 %v797, 0.70710677
  %v858 = vmul.f32 %v800, 0.70710677
  %v859 = vmul.f32 %v805, 0.70710677
  %v860 = vmul.f32 %v808, 0.70710677
  %v861 = vmul.f32 %v813, 0.70710677
  %v862 = vmul.f32 %v816, 0.70710677
  %v863 = vmul.f32 %v821, 0.70710677
  %v864 = vmul.f32 %v824, 0.70710677
  %v865 = vmul.f32 %v829, 0.70710677
  %v866 = vmul.f32 %v832, 0.70710677
  %v867 = verf.f32.pop %v851
  %v868 = verf.f32.pop %v852
  %v869 = verf.f32.pop %v853
  %v870 = verf.f32.pop %v854
  %v871 = verf.f32.pop %v855
  %v872 = verf.f32.pop %v856
  %v873 = verf.f32.pop %v857
  %v874 = verf.f32.pop %v858
  %v875 = verf.f32.pop %v859
  %v876 = verf.f32.pop %v860
  %v877 = verf.f32.pop %v861
  %v878 = verf.f32.pop %v862
  %v879 = verf.f32.pop %v863
  %v880 = verf.f32.pop %v864
  %v881 = verf.f32.pop %v865
  %v882 = verf.f32.pop %v866
  %v883 = vadd.f32 %v867, 1.0
  %v884 = vadd.f32 %v868, 1.0
  %v885 = vadd.f32 %v869, 1.0
  %v886 = vadd.f32 %v870, 1.0
  %v887 = vadd.f32 %v871, 1.0
  %v888 = vadd.f32 %v872, 1.0
  %v889 = vadd.f32 %v873, 1.0
  %v890 = vadd.f32 %v874, 1.0
  %v891 = vadd.f32 %v875, 1.0
  %v892 = vadd.f32 %v876, 1.0
  %v893 = vadd.f32 %v877, 1.0
  %v894 = vadd.f32 %v878, 1.0
  %v895 = vadd.f32 %v879, 1.0
  %v896 = vadd.f32 %v880, 1.0
  %v897 = vadd.f32 %v881, 1.0
  %v898 = vadd.f32 %v882, 1.0
  %v899 = vmul.f32 %v835, %v883
  %v900 = vmul.f32 %v836, %v884
  %v901 = vmul.f32 %v837, %v885
  %v902 = vmul.f32 %v838, %v886
  %v903 = vmul.f32 %v839, %v887
  %v904 = vmul.f32 %v840, %v888
  %v905 = vmul.f32 %v841, %v889
  %v906 = vmul.f32 %v842, %v890
  %v907 = vmul.f32 %v843, %v891
  %v908 = vmul.f32 %v844, %v892
  %v909 = vmul.f32 %v845, %v893
  %v910 = vmul.f32 %v846, %v894
  %v911 = vmul.f32 %v847, %v895
  %v912 = vmul.f32 %v848, %v896
  %v913 = vmul.f32 %v849, %v897
  %v914 = vmul.f32 %v850, %v898
  %v915 = vpack.c.bf16 %v900, %v899
  %v916 = vpack.c.bf16 %v902, %v901
  %v917 = vpack.c.bf16 %v904, %v903
  %v918 = vpack.c.bf16 %v906, %v905
  %v919 = vpack.c.bf16 %v908, %v907
  %v920 = vpack.c.bf16 %v910, %v909
  %v921 = vpack.c.bf16 %v912, %v911
  %v922 = vpack.c.bf16 %v914, %v913
  %923 = vst [vmem:[#allocation2] sm:$0xff] %v915
  %924 = vst [vmem:[#allocation2 + $0x8] sm:$0xff] %v916
  %925 = vst [vmem:[#allocation2 + $0x10] sm:$0xff] %v917
  %926 = vst [vmem:[#allocation2 + $0x18] sm:$0xff] %v918
  %927 = vst [vmem:[#allocation2 + $0x20] sm:$0xff] %v919
  %928 = vst [vmem:[#allocation2 + $0x28] sm:$0xff] %v920
  %929 = vst [vmem:[#allocation2 + $0x30] sm:$0xff] %v921
  %930 = vst [vmem:[#allocation2 + $0x38] sm:$0xff] %v922
  %v931 = vld [vmem:[#allocation2] sm:$0xff]
  %v932 = vld [vmem:[#allocation2 + $0x8] sm:$0xff]
  %v933 = vld [vmem:[#allocation2 + $0x10] sm:$0xff]
  %v934 = vld [vmem:[#allocation2 + $0x18] sm:$0xff]
  %v935 = vld [vmem:[#allocation2 + $0x20] sm:$0xff]
  %v936 = vld [vmem:[#allocation2 + $0x28] sm:$0xff]
  %v937 = vld [vmem:[#allocation2 + $0x30] sm:$0xff]
  %v938 = vld [vmem:[#allocation2 + $0x38] sm:$0xff]
  %s939 = scalar_lea.vmem %s4, 64
  %v940 = vld [vmem:[%s939] sm:$0xf]
  %v941 = vld [vmem:[%s939 + $0x4] sm:$0xf]
  %v942 = vld [vmem:[%s939 + $0x8] sm:$0xf]
  %v943 = vld [vmem:[%s939 + $0xc] sm:$0xf]
  %v944 = vld [vmem:[%s939 + $0x10] sm:$0xf]
  %v945 = vld [vmem:[%s939 + $0x14] sm:$0xf]
  %v946 = vld [vmem:[%s939 + $0x18] sm:$0xf]
  %v947 = vld [vmem:[%s939 + $0x1c] sm:$0xf]
  %v948 = vld [vmem:[%s939 + $0x20] sm:$0xf]
  %v949 = vld [vmem:[%s939 + $0x24] sm:$0xf]
  %v950 = vld [vmem:[%s939 + $0x28] sm:$0xf]
  %v951 = vld [vmem:[%s939 + $0x2c] sm:$0xf]
  %v952 = vld [vmem:[%s939 + $0x30] sm:$0xf]
  %v953 = vld [vmem:[%s939 + $0x34] sm:$0xf]
  %v954 = vld [vmem:[%s939 + $0x38] sm:$0xf]
  %v955 = vld [vmem:[%s939 + $0x3c] sm:$0xf]
  %s956 = scalar_lea.vmem %s5, 1
  %v957 = vld [vmem:[%s956] sm:$0x1]
  %958 = vmatprep.subr.bf16.mxu0 0
  %959 = vmatpush1.bf16.msra.mxu0 %v931
  %960 = vmatprep.subr.bf16.mxu0 0
  %961 = vmatpush1.bf16.msra.mxu0 %v932
  %962 = vmatprep.subr.bf16.mxu0 0
  %963 = vmatpush1.bf16.msra.mxu0 %v933
  %964 = vmatprep.subr.bf16.mxu0 0
  %965 = vmatpush1.bf16.msra.mxu0 %v934
  %966 = vmatprep.subr.bf16.mxu0 0
  %967 = vmatpush1.bf16.msra.mxu0 %v935
  %968 = vmatprep.subr.bf16.mxu0 0
  %969 = vmatpush1.bf16.msra.mxu0 %v936
  %970 = vmatprep.subr.bf16.mxu0 0
  %971 = vmatpush1.bf16.msra.mxu0 %v937
  %972 = vmatprep.subr.bf16.mxu0 0
  %973 = vmatpush1.bf16.msra.mxu0 %v938
  %974 = vmatprep.subr.bf16.mxu0 0
  %975 = vmatpush1.bf16.msra.mxu0 0
  %976 = vmatprep.subr.bf16.mxu0 0
  %977 = vmatpush1.bf16.msra.mxu0 0
  %978 = vmatprep.subr.bf16.mxu0 0
  %979 = vmatpush1.bf16.msra.mxu0 0
  %980 = vmatprep.subr.bf16.mxu0 0
  %981 = vmatpush1.bf16.msra.mxu0 0
  %982 = vmatprep.subr.bf16.mxu0 0
  %983 = vmatpush1.bf16.msra.mxu0 0
  %984 = vmatprep.subr.bf16.mxu0 0
  %985 = vmatpush1.bf16.msra.mxu0 0
  %986 = vmatprep.subr.bf16.mxu0 0
  %987 = vmatpush1.bf16.msra.mxu0 0
  %988 = vmatprep.subr.bf16.mxu0 0
  %989 = vmatpush1.bf16.msra.mxu0 0
  %990 = vmatprep.mubr.bf16.mxu0 0
  %991 = vmatmul.mubr.bf16.gmra.mrb[0].mxu0 %v138
  %v992 = vpop.f32.mrb[0].mxu0
  %v993 = vadd.f32 0.0, %v992
  %v994 = vpop.f32.mrb[0].mxu0
  %v995 = vpop.f32.mrb[0].mxu0
  %v996 = vadd.f32 0.0, %v995
  %v997 = vpop.f32.mrb[0].mxu0
  %998 = vmatprep.mubr.bf16.mxu0 0
  %999 = vmatmul.mubr.bf16.gmra.mrb[0].mxu0 %v139
  %v1000 = vpop.f32.mrb[0].mxu0
  %v1001 = vadd.f32 0.0, %v1000
  %v1002 = vpop.f32.mrb[0].mxu0
  %v1003 = vpop.f32.mrb[0].mxu0
  %v1004 = vadd.f32 0.0, %v1003
  %v1005 = vpop.f32.mrb[0].mxu0
  %1006 = vmatprep.mubr.bf16.mxu0 0
  %1007 = vmatmul.mubr.bf16.gmra.mrb[0].mxu0 %v140
  %v1008 = vpop.f32.mrb[0].mxu0
  %v1009 = vadd.f32 0.0, %v1008
  %v1010 = vpop.f32.mrb[0].mxu0
  %v1011 = vpop.f32.mrb[0].mxu0
  %v1012 = vadd.f32 0.0, %v1011
  %v1013 = vpop.f32.mrb[0].mxu0
  %1014 = vmatprep.mubr.bf16.mxu0 0
  %1015 = vmatmul.mubr.bf16.gmra.mrb[0].mxu0 %v141
  %v1016 = vpop.f32.mrb[0].mxu0
  %v1017 = vadd.f32 0.0, %v1016
  %v1018 = vpop.f32.mrb[0].mxu0
  %v1019 = vpop.f32.mrb[0].mxu0
  %v1020 = vadd.f32 0.0, %v1019
  %v1021 = vpop.f32.mrb[0].mxu0
  %1022 = vmatprep.mubr.bf16.mxu0 0
  %1023 = vmatmul.mubr.bf16.gmra.mrb[0].mxu0 %v142
  %v1024 = vpop.f32.mrb[0].mxu0
  %v1025 = vadd.f32 0.0, %v1024
  %v1026 = vpop.f32.mrb[0].mxu0
  %v1027 = vpop.f32.mrb[0].mxu0
  %v1028 = vadd.f32 0.0, %v1027
  %v1029 = vpop.f32.mrb[0].mxu0
  %1030 = vmatprep.mubr.bf16.mxu0 0
  %1031 = vmatmul.mubr.bf16.gmra.mrb[0].mxu0 %v143
  %v1032 = vpop.f32.mrb[0].mxu0
  %v1033 = vadd.f32 0.0, %v1032
  %v1034 = vpop.f32.mrb[0].mxu0
  %v1035 = vpop.f32.mrb[0].mxu0
  %v1036 = vadd.f32 0.0, %v1035
  %v1037 = vpop.f32.mrb[0].mxu0
  %1038 = vmatprep.mubr.bf16.mxu0 0
  %1039 = vmatmul.mubr.bf16.gmra.mrb[0].mxu0 %v144
  %v1040 = vpop.f32.mrb[0].mxu0
  %v1041 = vadd.f32 0.0, %v1040
  %v1042 = vpop.f32.mrb[0].mxu0
  %v1043 = vpop.f32.mrb[0].mxu0
  %v1044 = vadd.f32 0.0, %v1043
  %v1045 = vpop.f32.mrb[0].mxu0
  %1046 = vmatprep.mubr.bf16.mxu0 0
  %1047 = vmatmul.mubr.bf16.gmra.mrb[0].mxu0 %v145
  %v1048 = vpop.f32.mrb[0].mxu0
  %v1049 = vadd.f32 0.0, %v1048
  %v1050 = vpop.f32.mrb[0].mxu0
  %v1051 = vpop.f32.mrb[0].mxu0
  %v1052 = vadd.f32 0.0, %v1051
  %v1053 = vpop.f32.mrb[0].mxu0
  %1054 = vdwg.mxu0
  %v1055 = vpack.c.bf16 %v996, %v993
  %v1056 = vpack.c.bf16 %v1004, %v1001
  %v1057 = vpack.c.bf16 %v1012, %v1009
  %v1058 = vpack.c.bf16 %v1020, %v1017
  %v1059 = vpack.c.bf16 %v1028, %v1025
  %v1060 = vpack.c.bf16 %v1036, %v1033
  %v1061 = vpack.c.bf16 %v1044, %v1041
  %v1062 = vpack.c.bf16 %v1052, %v1049
  %v1064 = vlaneseq
  %v1065 = vshrl.u32 %v1064, 7
  %v1066 = vsub.s32 0, %v1065
  %v1067 = vrot.slane %v957, %v1066
  %v1085 = vunpack.c.l.b16 %v940
  %v1086 = vunpack.c.l.b16 %v941
  %v1087 = vunpack.c.l.b16 %v942
  %v1088 = vunpack.c.l.b16 %v943
  %v1089 = vunpack.c.l.b16 %v944
  %v1090 = vunpack.c.l.b16 %v945
  %v1091 = vunpack.c.l.b16 %v946
  %v1092 = vunpack.c.l.b16 %v947
  %v1093 = vunpack.c.l.b16 %v948
  %v1094 = vunpack.c.l.b16 %v949
  %v1095 = vunpack.c.l.b16 %v950
  %v1096 = vunpack.c.l.b16 %v951
  %v1097 = vunpack.c.l.b16 %v952
  %v1098 = vunpack.c.l.b16 %v953
  %v1099 = vunpack.c.l.b16 %v954
  %v1100 = vunpack.c.l.b16 %v955
  %v1101 = vpack.c.b16 %v1086, %v1085
  %v1102 = vpack.c.b16 %v1088, %v1087
  %v1103 = vpack.c.b16 %v1090, %v1089
  %v1104 = vpack.c.b16 %v1092, %v1091
  %v1105 = vpack.c.b16 %v1094, %v1093
  %v1106 = vpack.c.b16 %v1096, %v1095
  %v1107 = vpack.c.b16 %v1098, %v1097
  %v1108 = vpack.c.b16 %v1100, %v1099
  %1117 = vmatprep.subr.bf16.mxu0 0
  %1118 = vmatpush1.bf16.msra.mxu0 %v1101
  %1119 = vmatprep.subr.bf16.mxu0 0
  %1120 = vmatpush1.bf16.msra.mxu0 %v1102
  %1121 = vmatprep.subr.bf16.mxu0 0
  %1122 = vmatpush1.bf16.msra.mxu0 %v1103
  %1123 = vmatprep.subr.bf16.mxu0 0
  %1124 = vmatpush1.bf16.msra.mxu0 %v1104
  %1125 = vmatprep.subr.bf16.mxu0 0
  %1126 = vmatpush1.bf16.msra.mxu0 %v1105
  %1127 = vmatprep.subr.bf16.mxu0 0
  %1128 = vmatpush1.bf16.msra.mxu0 %v1106
  %1129 = vmatprep.subr.bf16.mxu0 0
  %1130 = vmatpush1.bf16.msra.mxu0 %v1107
  %1131 = vmatprep.subr.bf16.mxu0 0
  %1132 = vmatpush1.bf16.msra.mxu0 %v1108
  %1133 = vmatprep.subr.bf16.mxu0 0
  %1134 = vmatpush1.bf16.msra.mxu0 0
  %1135 = vmatprep.subr.bf16.mxu0 0
  %1136 = vmatpush1.bf16.msra.mxu0 0
  %1137 = vmatprep.subr.bf16.mxu0 0
  %1138 = vmatpush1.bf16.msra.mxu0 0
  %1139 = vmatprep.subr.bf16.mxu0 0
  %1140 = vmatpush1.bf16.msra.mxu0 0
  %1141 = vmatprep.subr.bf16.mxu0 0
  %1142 = vmatpush1.bf16.msra.mxu0 0
  %1143 = vmatprep.subr.bf16.mxu0 0
  %1144 = vmatpush1.bf16.msra.mxu0 0
  %1145 = vmatprep.subr.bf16.mxu0 0
  %1146 = vmatpush1.bf16.msra.mxu0 0
  %1147 = vmatprep.subr.bf16.mxu0 0
  %1148 = vmatpush1.bf16.msra.mxu0 0
  %1149 = vmatprep.mubr.bf16.mxu0 0
  %1150 = vmatmul.mubr.bf16.gmra.mrb[0].mxu0 %v1055
  %v1151 = vpop.f32.mrb[0].mxu0
  %v1152 = vadd.f32 %v1067, %v1151
  %v1153 = vpop.f32.mrb[0].mxu0
  %v1154 = vpop.f32.mrb[0].mxu0
  %v1155 = vadd.f32 %v1067, %v1154
  %v1156 = vpop.f32.mrb[0].mxu0
  %1157 = vmatprep.mubr.bf16.mxu0 0
  %1158 = vmatmul.mubr.bf16.gmra.mrb[0].mxu0 %v1056
  %v1159 = vpop.f32.mrb[0].mxu0
  %v1160 = vadd.f32 %v1067, %v1159
  %v1161 = vpop.f32.mrb[0].mxu0
  %v1162 = vpop.f32.mrb[0].mxu0
  %v1163 = vadd.f32 %v1067, %v1162
  %v1164 = vpop.f32.mrb[0].mxu0
  %1165 = vmatprep.mubr.bf16.mxu0 0
  %1166 = vmatmul.mubr.bf16.gmra.mrb[0].mxu0 %v1057
  %v1167 = vpop.f32.mrb[0].mxu0
  %v1168 = vadd.f32 %v1067, %v1167
  %v1169 = vpop.f32.mrb[0].mxu0
  %v1170 = vpop.f32.mrb[0].mxu0
  %v1171 = vadd.f32 %v1067, %v1170
  %v1172 = vpop.f32.mrb[0].mxu0
  %1173 = vmatprep.mubr.bf16.mxu0 0
  %1174 = vmatmul.mubr.bf16.gmra.mrb[0].mxu0 %v1058
  %v1175 = vpop.f32.mrb[0].mxu0
  %v1176 = vadd.f32 %v1067, %v1175
  %v1177 = vpop.f32.mrb[0].mxu0
  %v1178 = vpop.f32.mrb[0].mxu0
  %v1179 = vadd.f32 %v1067, %v1178
  %v1180 = vpop.f32.mrb[0].mxu0
  %1181 = vmatprep.mubr.bf16.mxu0 0
  %1182 = vmatmul.mubr.bf16.gmra.mrb[0].mxu0 %v1059
  %v1183 = vpop.f32.mrb[0].mxu0
  %v1184 = vadd.f32 %v1067, %v1183
  %v1185 = vpop.f32.mrb[0].mxu0
  %v1186 = vpop.f32.mrb[0].mxu0
  %v1187 = vadd.f32 %v1067, %v1186
  %v1188 = vpop.f32.mrb[0].mxu0
  %1189 = vmatprep.mubr.bf16.mxu0 0
  %1190 = vmatmul.mubr.bf16.gmra.mrb[0].mxu0 %v1060
  %v1191 = vpop.f32.mrb[0].mxu0
  %v1192 = vadd.f32 %v1067, %v1191
  %v1193 = vpop.f32.mrb[0].mxu0
  %v1194 = vpop.f32.mrb[0].mxu0
  %v1195 = vadd.f32 %v1067, %v1194
  %v1196 = vpop.f32.mrb[0].mxu0
  %1197 = vmatprep.mubr.bf16.mxu0 0
  %1198 = vmatmul.mubr.bf16.gmra.mrb[0].mxu0 %v1061
  %v1199 = vpop.f32.mrb[0].mxu0
  %v1200 = vadd.f32 %v1067, %v1199
  %v1201 = vpop.f32.mrb[0].mxu0
  %v1202 = vpop.f32.mrb[0].mxu0
  %v1203 = vadd.f32 %v1067, %v1202
  %v1204 = vpop.f32.mrb[0].mxu0
  %1205 = vmatprep.mubr.bf16.mxu0 0
  %1206 = vmatmul.mubr.bf16.gmra.mrb[0].mxu0 %v1062
  %v1207 = vpop.f32.mrb[0].mxu0
  %v1208 = vadd.f32 %v1067, %v1207
  %v1209 = vpop.f32.mrb[0].mxu0
  %v1210 = vpop.f32.mrb[0].mxu0
  %v1211 = vadd.f32 %v1067, %v1210
  %v1212 = vpop.f32.mrb[0].mxu0
  %1213 = vdwg.mxu0
  %v1214 = vmul.f32 %v1152, 0.5
  %v1215 = vmul.f32 %v1155, 0.5
  %v1216 = vmul.f32 %v1160, 0.5
  %v1217 = vmul.f32 %v1163, 0.5
  %v1218 = vmul.f32 %v1168, 0.5
  %v1219 = vmul.f32 %v1171, 0.5
  %v1220 = vmul.f32 %v1176, 0.5
  %v1221 = vmul.f32 %v1179, 0.5
  %v1222 = vmul.f32 %v1184, 0.5
  %v1223 = vmul.f32 %v1187, 0.5
  %v1224 = vmul.f32 %v1192, 0.5
  %v1225 = vmul.f32 %v1195, 0.5
  %v1226 = vmul.f32 %v1200, 0.5
  %v1227 = vmul.f32 %v1203, 0.5
  %v1228 = vmul.f32 %v1208, 0.5
  %v1229 = vmul.f32 %v1211, 0.5
  %v1230 = vmul.f32 %v1152, 0.70710677
  %v1231 = vmul.f32 %v1155, 0.70710677
  %v1232 = vmul.f32 %v1160, 0.70710677
  %v1233 = vmul.f32 %v1163, 0.70710677
  %v1234 = vmul.f32 %v1168, 0.70710677
  %v1235 = vmul.f32 %v1171, 0.70710677
  %v1236 = vmul.f32 %v1176, 0.70710677
  %v1237 = vmul.f32 %v1179, 0.70710677
  %v1238 = vmul.f32 %v1184, 0.70710677
  %v1239 = vmul.f32 %v1187, 0.70710677
  %v1240 = vmul.f32 %v1192, 0.70710677
  %v1241 = vmul.f32 %v1195, 0.70710677
  %v1242 = vmul.f32 %v1200, 0.70710677
  %v1243 = vmul.f32 %v1203, 0.70710677
  %v1244 = vmul.f32 %v1208, 0.70710677
  %v1245 = vmul.f32 %v1211, 0.70710677
  %v1246 = verf.f32.pop %v1230
  %v1247 = verf.f32.pop %v1231
  %v1248 = verf.f32.pop %v1232
  %v1249 = verf.f32.pop %v1233
  %v1250 = verf.f32.pop %v1234
  %v1251 = verf.f32.pop %v1235
  %v1252 = verf.f32.pop %v1236
  %v1253 = verf.f32.pop %v1237
  %v1254 = verf.f32.pop %v1238
  %v1255 = verf.f32.pop %v1239
  %v1256 = verf.f32.pop %v1240
  %v1257 = verf.f32.pop %v1241
  %v1258 = verf.f32.pop %v1242
  %v1259 = verf.f32.pop %v1243
  %v1260 = verf.f32.pop %v1244
  %v1261 = verf.f32.pop %v1245
  %v1262 = vadd.f32 %v1246, 1.0
  %v1263 = vadd.f32 %v1247, 1.0
  %v1264 = vadd.f32 %v1248, 1.0
  %v1265 = vadd.f32 %v1249, 1.0
  %v1266 = vadd.f32 %v1250, 1.0
  %v1267 = vadd.f32 %v1251, 1.0
  %v1268 = vadd.f32 %v1252, 1.0
  %v1269 = vadd.f32 %v1253, 1.0
  %v1270 = vadd.f32 %v1254, 1.0
  %v1271 = vadd.f32 %v1255, 1.0
  %v1272 = vadd.f32 %v1256, 1.0
  %v1273 = vadd.f32 %v1257, 1.0
  %v1274 = vadd.f32 %v1258, 1.0
  %v1275 = vadd.f32 %v1259, 1.0
  %v1276 = vadd.f32 %v1260, 1.0
  %v1277 = vadd.f32 %v1261, 1.0
  %v1278 = vmul.f32 %v1214, %v1262
  %v1279 = vmul.f32 %v1215, %v1263
  %v1280 = vmul.f32 %v1216, %v1264
  %v1281 = vmul.f32 %v1217, %v1265
  %v1282 = vmul.f32 %v1218, %v1266
  %v1283 = vmul.f32 %v1219, %v1267
  %v1284 = vmul.f32 %v1220, %v1268
  %v1285 = vmul.f32 %v1221, %v1269
  %v1286 = vmul.f32 %v1222, %v1270
  %v1287 = vmul.f32 %v1223, %v1271
  %v1288 = vmul.f32 %v1224, %v1272
  %v1289 = vmul.f32 %v1225, %v1273
  %v1290 = vmul.f32 %v1226, %v1274
  %v1291 = vmul.f32 %v1227, %v1275
  %v1292 = vmul.f32 %v1228, %v1276
  %v1293 = vmul.f32 %v1229, %v1277
  %v1294 = vsel %vm57, 1, 0
  %v1295 = vsel %vm58, 1, 0
  %v1296 = vsel %vm59, 1, 0
  %v1297 = vsel %vm60, 1, 0
  %v1298 = vsel %vm61, 1, 0
  %v1299 = vsel %vm62, 1, 0
  %v1300 = vsel %vm63, 1, 0
  %v1301 = vsel %vm64, 1, 0
  %v1302 = vsel %vm65, 1, 0
  %v1303 = vsel %vm66, 1, 0
  %v1304 = vsel %vm67, 1, 0
  %v1305 = vsel %vm68, 1, 0
  %v1306 = vsel %vm69, 1, 0
  %v1307 = vsel %vm70, 1, 0
  %v1308 = vsel %vm71, 1, 0
  %v1309 = vsel %vm72, 1, 0
  %vm1310 = vcmp.eq.s32.totalorder %v1294, 1
  %vm1311 = vcmp.eq.s32.totalorder %v1295, 1
  %vm1312 = vcmp.eq.s32.totalorder %v1296, 1
  %vm1313 = vcmp.eq.s32.totalorder %v1297, 1
  %vm1314 = vcmp.eq.s32.totalorder %v1298, 1
  %vm1315 = vcmp.eq.s32.totalorder %v1299, 1
  %vm1316 = vcmp.eq.s32.totalorder %v1300, 1
  %vm1317 = vcmp.eq.s32.totalorder %v1301, 1
  %vm1318 = vcmp.eq.s32.totalorder %v1302, 1
  %vm1319 = vcmp.eq.s32.totalorder %v1303, 1
  %vm1320 = vcmp.eq.s32.totalorder %v1304, 1
  %vm1321 = vcmp.eq.s32.totalorder %v1305, 1
  %vm1322 = vcmp.eq.s32.totalorder %v1306, 1
  %vm1323 = vcmp.eq.s32.totalorder %v1307, 1
  %vm1324 = vcmp.eq.s32.totalorder %v1308, 1
  %vm1325 = vcmp.eq.s32.totalorder %v1309, 1
  %v1326 = vsel %vm1310, %v1278, 0.0
  %v1327 = vsel %vm1311, %v1279, 0.0
  %v1328 = vsel %vm1312, %v1280, 0.0
  %v1329 = vsel %vm1313, %v1281, 0.0
  %v1330 = vsel %vm1314, %v1282, 0.0
  %v1331 = vsel %vm1315, %v1283, 0.0
  %v1332 = vsel %vm1316, %v1284, 0.0
  %v1333 = vsel %vm1317, %v1285, 0.0
  %v1334 = vsel %vm1318, %v1286, 0.0
  %v1335 = vsel %vm1319, %v1287, 0.0
  %v1336 = vsel %vm1320, %v1288, 0.0
  %v1337 = vsel %vm1321, %v1289, 0.0
  %v1338 = vsel %vm1322, %v1290, 0.0
  %v1339 = vsel %vm1323, %v1291, 0.0
  %v1340 = vsel %vm1324, %v1292, 0.0
  %v1341 = vsel %vm1325, %v1293, 0.0
  %1342 = vst [vmem:[%s6] sm:$0xff] %v1326
  %1343 = vst [vmem:[%s6 + $0x8] sm:$0xff] %v1327
  %1344 = vst [vmem:[%s6 + $0x10] sm:$0xff] %v1328
  %1345 = vst [vmem:[%s6 + $0x18] sm:$0xff] %v1329
  %1346 = vst [vmem:[%s6 + $0x20] sm:$0xff] %v1330
  %1347 = vst [vmem:[%s6 + $0x28] sm:$0xff] %v1331
  %1348 = vst [vmem:[%s6 + $0x30] sm:$0xff] %v1332
  %1349 = vst [vmem:[%s6 + $0x38] sm:$0xff] %v1333
  %1350 = vst [vmem:[%s6 + $0x40] sm:$0xff] %v1334
  %1351 = vst [vmem:[%s6 + $0x48] sm:$0xff] %v1335
  %1352 = vst [vmem:[%s6 + $0x50] sm:$0xff] %v1336
  %1353 = vst [vmem:[%s6 + $0x58] sm:$0xff] %v1337
  %1354 = vst [vmem:[%s6 + $0x60] sm:$0xff] %v1338
  %1355 = vst [vmem:[%s6 + $0x68] sm:$0xff] %v1339
  %1356 = vst [vmem:[%s6 + $0x70] sm:$0xff] %v1340
  %1357 = vst [vmem:[%s6 + $0x78] sm:$0xff] %v1341
  // Predicated region
  $region26: #{_lambda_.1} parent=0 // pred_check
    _
  $region27: #{_lambda_.1} parent=0 // pred_check_branch
    %1359 = sbr.rel (0) target = $region29
  $region28: #{_lambda_.1} parent=0 // pred_region
    _
  $region29: #{_lambda_.1} parent=0 // pred_fallthru
    _
  // Predicated region
  $region30: #{_lambda_.1} parent=0 // pred_check
    _
  $region31: #{_lambda_.1} parent=0 // pred_check_branch
    %1361 = sbr.rel (0) target = $region33
  $region32: #{_lambda_.1} parent=0 // pred_region
    _
  $region33: #{_lambda_.1} parent=0 // pred_fallthru
    _

</llo_original>
